<compile_context>
chip_gen: v7x
topology: tpu7x:2x2x1
jax: 0.10.0
libtpu: 0.0.40
codegen_flags: <defaults>
</compile_context>

<pallas_src>
import functools

import jax
import jax.numpy as jnp
from jax.experimental import pallas as pl
from jax.experimental.pallas import tpu as pltpu

EPS = 1e-5
LANE = 128
NEG = -3.0e38  # finite f32 sentinel for head-bias pad lanes (argmax can't pick them)


def _round_up(n, m=LANE):
    return ((n + m - 1) // m) * m


def _pad_to(a, shape):
    return jnp.pad(a, [(0, t - s) for s, t in zip(a.shape, shape)])


# ----------------------------------------------------------------------------
# Kernel
# ----------------------------------------------------------------------------
def dqn_policy_kernel(h1p, h2p, ap,
                      x_ref, w1_ref, w2_ref, w3_ref, rows_ref,
                      q_ref, act_ref):
    x = x_ref[...]
    rows = rows_ref[...]  # (8, F) packed row-parameter slab: one vreg load

    def lin_relu_bn(h, w_ref, b, g, be):
        # Linear (+bias) on the MXU, then ReLU.
        h = jnp.dot(h, w_ref[...], preferred_element_type=jnp.float32) + b
        h = jnp.maximum(h, 0.0)
        # Training-mode BN, biased variance, centered (numerically safe) form.
        mean = jnp.mean(h, axis=0, keepdims=True)
        hc = h - mean
        var = jnp.mean(hc * hc, axis=0, keepdims=True)
        inv = jax.lax.rsqrt(var + EPS)              # EUP slot: ~free
        return hc * (g * inv) + be                  # folded scale/shift

    h = lin_relu_bn(x, w1_ref, rows[0:1, :h1p], rows[1:2, :h1p], rows[2:3, :h1p])
    h = lin_relu_bn(h, w2_ref, rows[3:4, :h2p], rows[4:5, :h2p], rows[5:6, :h2p])

    # Final Linear head -> Q values (lane-padded; pad lanes carry NEG bias so
    # they never win the argmax below).
    q = jnp.dot(h, w3_ref[...], preferred_element_type=jnp.float32) + rows[6:7, :ap]
    q_ref[...] = q

    # Fused _get_action: first maximal index (matches torch/jnp argmax).
    lane = jax.lax.broadcasted_iota(jnp.int32, q.shape, 1)
    row_max = jnp.max(q, axis=1, keepdims=True)
    idx = jnp.where(q == row_max, lane, q.shape[1])
    act_ref[...] = jnp.min(idx, axis=1, keepdims=True).astype(jnp.int32)


# ----------------------------------------------------------------------------
# One-time parameter preparation (padding / packing) — NOT in the call path.
# ----------------------------------------------------------------------------
def prepare_params(params):
    """Pad weights to 128-lane widths and pack the seven (1,F) row params into
    one (8, F) slab.  Returns (prepared_pytree, n_actions)."""
    (w1, b1, g1, be1, w2, b2, g2, be2, w3, b3) = params
    H1, H2, A = w1.shape[1], w2.shape[1], w3.shape[1]
    H1p, H2p, Ap = _round_up(H1), _round_up(H2), _round_up(A)
    F = max(H1p, H2p, Ap)

    w1p = _pad_to(w1.astype(jnp.float32), (w1.shape[0], H1p))
    w2p = _pad_to(w2.astype(jnp.float32), (H1p, H2p))
    w3p = _pad_to(w3.astype(jnp.float32), (H2p, Ap))

    def row(a, fill=0.0):
        r = jnp.full((1, F), fill, jnp.float32)
        return r.at[:, :a.shape[1]].set(a.astype(jnp.float32))

    # Zero-padded gamma/beta pin the padded BN features to exactly 0; the head
    # bias row uses NEG in its pad lanes so argmax can never select them.
    rows = jnp.concatenate([
        row(b1), row(g1), row(be1),
        row(b2), row(g2), row(be2),
        row(b3, fill=NEG),
        jnp.zeros((1, F), jnp.float32),       # pad slab to 8 sublanes
    ], axis=0)
    return (w1p, w2p, w3p, rows), A


# ----------------------------------------------------------------------------
# Jitted forward: single Pallas call; output slices fuse under jit.
# ----------------------------------------------------------------------------
@functools.partial(jax.jit, static_argnums=(2,))
def dqn_policy_forward(x, prepared, n_actions):
    """Fused forward + _get_action.  Returns (q (B, A) f32, actions (B,) int32)."""
    w1p, w2p, w3p, rows = prepared
    B = x.shape[0]
    H1p, H2p, Ap = w1p.shape[1], w2p.shape[1], w3p.shape[1]

    vmem = pl.BlockSpec(memory_space=pltpu.MemorySpace.VMEM)
    q_pad, act = pl.pallas_call(
        functools.partial(dqn_policy_kernel, H1p, H2p, Ap),
        out_shape=(jax.ShapeDtypeStruct((B, Ap), jnp.float32),
                   jax.ShapeDtypeStruct((B, 1), jnp.int32)),
        in_specs=[vmem] * 5,
        out_specs=(vmem, vmem),
    )(x.astype(jnp.float32), w1p, w2p, w3p, rows)
    return q_pad[:, :n_actions], act[:, 0]


# ----------------------------------------------------------------------------
# Pure-JAX reference of the PyTorch module (training-mode BatchNorm).
# ----------------------------------------------------------------------------
def reference_forward(x, params):
    (w1, b1, g1, be1, w2, b2, g2, be2, w3, b3) = params

    def lin_relu_bn(h, w, b, g, be):
        h = jnp.maximum(h @ w + b, 0.0)
        mean = jnp.mean(h, axis=0, keepdims=True)
        var = jnp.mean((h - mean) ** 2, axis=0, keepdims=True)
        return g * (h - mean) / jnp.sqrt(var + EPS) + be

    h = lin_relu_bn(x, w1, b1, g1, be1)
    h = lin_relu_bn(h, w2, b2, g2, be2)
    return h @ w3 + b3


def make_params(key, in_features, lin_layers, n_actions):
    """Deterministic synthetic parameters (PyTorch-like uniform fan-in init)."""
    sizes = [in_features] + lin_layers
    params = []
    for i in range(len(sizes) - 1):
        key, kw, kb, kg, kbe = jax.random.split(key, 5)
        bound = 1.0 / jnp.sqrt(sizes[i])
        w = jax.random.uniform(kw, (sizes[i], sizes[i + 1]), jnp.float32, -bound, bound)
        b = jax.random.uniform(kb, (1, sizes[i + 1]), jnp.float32, -bound, bound)
        g = 1.0 + 0.1 * jax.random.normal(kg, (1, sizes[i + 1]), jnp.float32)
        be = 0.1 * jax.random.normal(kbe, (1, sizes[i + 1]), jnp.float32)
        params += [w, b, g, be]
    key, kw, kb = jax.random.split(key, 3)
    bound = 1.0 / jnp.sqrt(sizes[-1])
    w3 = jax.random.uniform(kw, (sizes[-1], n_actions), jnp.float32, -bound, bound)
    b3 = jax.random.uniform(kb, (1, n_actions), jnp.float32, -bound, bound)
    params += [w3, b3]
    return tuple(params)


if __name__ == "__main__":
    B, IN_FEATURES, N_ACTIONS = 8, 32, 8
    LIN_LAYERS = [64, 64]

    key = jax.random.PRNGKey(0)
    key, kx = jax.random.split(key)
    x = jax.random.normal(kx, (B, IN_FEATURES), jnp.float32)
    params = make_params(key, IN_FEATURES, LIN_LAYERS, N_ACTIONS)

    # One-time (init-path) padding / packing; the per-call path is a single
    # jitted Pallas dispatch.
    prepared, n_actions = prepare_params(params)

    q, act = dqn_policy_forward(x, prepared, n_actions)
    q = jax.block_until_ready(q)
    act = jax.block_until_ready(act)

    q_ref = reference_forward(x, params)
    act_ref = jnp.argmax(q_ref, axis=1)

    assert q.shape == (B, N_ACTIONS)
    assert act.shape == (B,)
    assert jnp.allclose(q, q_ref, atol=1e-4, rtol=1e-4), "q mismatch vs reference"
    assert jnp.array_equal(act, act_ref), "action mismatch vs reference"

    print("KERNEL_OK")
</pallas_src>

<mosaic_0001>
module attributes {stable_mosaic.version = 11 : i64} {
  func.func @dqn_policy_kernel(%arg0: memref<8x32xf32, #tpu.memory_space<vmem>>, %arg1: memref<32x128xf32, #tpu.memory_space<vmem>>, %arg2: memref<128x128xf32, #tpu.memory_space<vmem>>, %arg3: memref<128x128xf32, #tpu.memory_space<vmem>>, %arg4: memref<8x128xf32, #tpu.memory_space<vmem>>, %arg5: memref<8x128xf32, #tpu.memory_space<vmem>>, %arg6: memref<8x1xi32, #tpu.memory_space<vmem>>) attributes {dimension_semantics = [], scalar_prefetch = 0 : i64, scratch_operands = 0 : i64, tpu.core_type = #tpu.core_type<tc>} {
    %c0 = arith.constant 0 : index
    %c0_0 = arith.constant 0 : index
    %0 = vector.load %arg0[%c0, %c0_0] : memref<8x32xf32, #tpu.memory_space<vmem>>, vector<8x32xf32>
    %c0_1 = arith.constant 0 : index
    %c0_2 = arith.constant 0 : index
    %1 = vector.load %arg4[%c0_1, %c0_2] : memref<8x128xf32, #tpu.memory_space<vmem>>, vector<8x128xf32>
    %2 = vector.extract_strided_slice %1 {offsets = [0, 0], sizes = [1, 128], strides = [1, 1]} : vector<8x128xf32> to vector<1x128xf32>
    %3 = vector.extract_strided_slice %1 {offsets = [1, 0], sizes = [1, 128], strides = [1, 1]} : vector<8x128xf32> to vector<1x128xf32>
    %4 = vector.extract_strided_slice %1 {offsets = [2, 0], sizes = [1, 128], strides = [1, 1]} : vector<8x128xf32> to vector<1x128xf32>
    %c0_3 = arith.constant 0 : index
    %c0_4 = arith.constant 0 : index
    %5 = vector.load %arg1[%c0_3, %c0_4] : memref<32x128xf32, #tpu.memory_space<vmem>>, vector<32x128xf32>
    %cst = arith.constant dense<0.000000e+00> : vector<8x128xf32>
    %6 = tpu.matmul %0, %5, %cst {dimension_numbers = #tpu.dot_dimension_numbers<[1], [0], [0], [1], [0, 0, 1, 1], [], []>} : vector<8x32xf32>, vector<32x128xf32>, vector<8x128xf32> -> vector<8x128xf32>
    %7 = vector.broadcast %2 : vector<1x128xf32> to vector<8x128xf32>
    %8 = arith.addf %6, %7 : vector<8x128xf32>
    %cst_5 = arith.constant 0.000000e+00 : f32
    %9 = vector.broadcast %cst_5 : f32 to vector<8x128xf32>
    %10 = arith.maximumf %8, %9 : vector<8x128xf32>
    %cst_6 = arith.constant dense<0.000000e+00> : vector<128xf32>
    %11 = vector.multi_reduction <add>, %10, %cst_6 [0] : vector<8x128xf32> to vector<128xf32>
    %12 = vector.shape_cast %11 : vector<128xf32> to vector<1x128xf32>
    %cst_7 = arith.constant 8.000000e+00 : f32
    %13 = vector.broadcast %cst_7 : f32 to vector<1x128xf32>
    %14 = arith.divf %12, %13 : vector<1x128xf32>
    %15 = vector.broadcast %14 : vector<1x128xf32> to vector<8x128xf32>
    %16 = arith.subf %10, %15 : vector<8x128xf32>
    %17 = arith.mulf %16, %16 : vector<8x128xf32>
    %cst_8 = arith.constant dense<0.000000e+00> : vector<128xf32>
    %18 = vector.multi_reduction <add>, %17, %cst_8 [0] : vector<8x128xf32> to vector<128xf32>
    %19 = vector.shape_cast %18 : vector<128xf32> to vector<1x128xf32>
    %cst_9 = arith.constant 8.000000e+00 : f32
    %20 = vector.broadcast %cst_9 : f32 to vector<1x128xf32>
    %21 = arith.divf %19, %20 : vector<1x128xf32>
    %cst_10 = arith.constant 9.99999974E-6 : f32
    %22 = vector.broadcast %cst_10 : f32 to vector<1x128xf32>
    %23 = arith.addf %21, %22 : vector<1x128xf32>
    %24 = math.rsqrt %23 : vector<1x128xf32>
    %25 = arith.mulf %3, %24 : vector<1x128xf32>
    %26 = vector.broadcast %25 : vector<1x128xf32> to vector<8x128xf32>
    %27 = arith.mulf %16, %26 : vector<8x128xf32>
    %28 = vector.broadcast %4 : vector<1x128xf32> to vector<8x128xf32>
    %29 = arith.addf %27, %28 : vector<8x128xf32>
    %30 = vector.extract_strided_slice %1 {offsets = [3, 0], sizes = [1, 128], strides = [1, 1]} : vector<8x128xf32> to vector<1x128xf32>
    %31 = vector.extract_strided_slice %1 {offsets = [4, 0], sizes = [1, 128], strides = [1, 1]} : vector<8x128xf32> to vector<1x128xf32>
    %32 = vector.extract_strided_slice %1 {offsets = [5, 0], sizes = [1, 128], strides = [1, 1]} : vector<8x128xf32> to vector<1x128xf32>
    %c0_11 = arith.constant 0 : index
    %c0_12 = arith.constant 0 : index
    %33 = vector.load %arg2[%c0_11, %c0_12] : memref<128x128xf32, #tpu.memory_space<vmem>>, vector<128x128xf32>
    %cst_13 = arith.constant dense<0.000000e+00> : vector<8x128xf32>
    %34 = tpu.matmul %29, %33, %cst_13 {dimension_numbers = #tpu.dot_dimension_numbers<[1], [0], [0], [1], [0, 0, 1, 1], [], []>} : vector<8x128xf32>, vector<128x128xf32>, vector<8x128xf32> -> vector<8x128xf32>
    %35 = vector.broadcast %30 : vector<1x128xf32> to vector<8x128xf32>
    %36 = arith.addf %34, %35 : vector<8x128xf32>
    %cst_14 = arith.constant 0.000000e+00 : f32
    %37 = vector.broadcast %cst_14 : f32 to vector<8x128xf32>
    %38 = arith.maximumf %36, %37 : vector<8x128xf32>
    %cst_15 = arith.constant dense<0.000000e+00> : vector<128xf32>
    %39 = vector.multi_reduction <add>, %38, %cst_15 [0] : vector<8x128xf32> to vector<128xf32>
    %40 = vector.shape_cast %39 : vector<128xf32> to vector<1x128xf32>
    %cst_16 = arith.constant 8.000000e+00 : f32
    %41 = vector.broadcast %cst_16 : f32 to vector<1x128xf32>
    %42 = arith.divf %40, %41 : vector<1x128xf32>
    %43 = vector.broadcast %42 : vector<1x128xf32> to vector<8x128xf32>
    %44 = arith.subf %38, %43 : vector<8x128xf32>
    %45 = arith.mulf %44, %44 : vector<8x128xf32>
    %cst_17 = arith.constant dense<0.000000e+00> : vector<128xf32>
    %46 = vector.multi_reduction <add>, %45, %cst_17 [0] : vector<8x128xf32> to vector<128xf32>
    %47 = vector.shape_cast %46 : vector<128xf32> to vector<1x128xf32>
    %cst_18 = arith.constant 8.000000e+00 : f32
    %48 = vector.broadcast %cst_18 : f32 to vector<1x128xf32>
    %49 = arith.divf %47, %48 : vector<1x128xf32>
    %cst_19 = arith.constant 9.99999974E-6 : f32
    %50 = vector.broadcast %cst_19 : f32 to vector<1x128xf32>
    %51 = arith.addf %49, %50 : vector<1x128xf32>
    %52 = math.rsqrt %51 : vector<1x128xf32>
    %53 = arith.mulf %31, %52 : vector<1x128xf32>
    %54 = vector.broadcast %53 : vector<1x128xf32> to vector<8x128xf32>
    %55 = arith.mulf %44, %54 : vector<8x128xf32>
    %56 = vector.broadcast %32 : vector<1x128xf32> to vector<8x128xf32>
    %57 = arith.addf %55, %56 : vector<8x128xf32>
    %c0_20 = arith.constant 0 : index
    %c0_21 = arith.constant 0 : index
    %58 = vector.load %arg3[%c0_20, %c0_21] : memref<128x128xf32, #tpu.memory_space<vmem>>, vector<128x128xf32>
    %cst_22 = arith.constant dense<0.000000e+00> : vector<8x128xf32>
    %59 = tpu.matmul %57, %58, %cst_22 {dimension_numbers = #tpu.dot_dimension_numbers<[1], [0], [0], [1], [0, 0, 1, 1], [], []>} : vector<8x128xf32>, vector<128x128xf32>, vector<8x128xf32> -> vector<8x128xf32>
    %60 = vector.extract_strided_slice %1 {offsets = [6, 0], sizes = [1, 128], strides = [1, 1]} : vector<8x128xf32> to vector<1x128xf32>
    %61 = vector.broadcast %60 : vector<1x128xf32> to vector<8x128xf32>
    %62 = arith.addf %59, %61 : vector<8x128xf32>
    %c0_23 = arith.constant 0 : index
    %c0_24 = arith.constant 0 : index
    %63 = vector.load %arg5[%c0_23, %c0_24] : memref<8x128xf32, #tpu.memory_space<vmem>>, vector<8x128xf32>
    tpu.vector_store %arg5[%c0_23, %c0_24], %62 {strides = array<i32>} : memref<8x128xf32, #tpu.memory_space<vmem>>, vector<8x128xf32>,
    %64 = tpu.iota {dimensions = array<i32: 1>} : vector<8x128xi32>
    %cst_25 = arith.constant dense<0xFF800000> : vector<8xf32>
    %65 = vector.multi_reduction <maximumf>, %62, %cst_25 [1] : vector<8x128xf32> to vector<8xf32>
    %66 = vector.shape_cast %65 : vector<8xf32> to vector<8x1xf32>
    %67 = vector.broadcast %66 : vector<8x1xf32> to vector<8x128xf32>
    %68 = arith.cmpf oeq, %62, %67 : vector<8x128xf32>
    %c128_i32 = arith.constant 128 : i32
    %69 = vector.broadcast %c128_i32 : i32 to vector<8x128xi32>
    %70 = arith.select %68, %64, %69 : vector<8x128xi1>, vector<8x128xi32>
    %cst_26 = arith.constant dense<2147483647> : vector<8xi32>
    %71 = vector.multi_reduction <minsi>, %70, %cst_26 [1] : vector<8x128xi32> to vector<8xi32>
    %72 = vector.shape_cast %71 : vector<8xi32> to vector<8x1xi32>
    %c0_27 = arith.constant 0 : index
    %c0_28 = arith.constant 0 : index
    %73 = vector.load %arg6[%c0_27, %c0_28] : memref<8x1xi32, #tpu.memory_space<vmem>>, vector<8x1xi32>
    tpu.vector_store %arg6[%c0_27, %c0_28], %72 {strides = array<i32>} : memref<8x1xi32, #tpu.memory_space<vmem>>, vector<8x1xi32>,
    return
  }
}

</mosaic_0001>

<llo_original>
// kernel: dqn_policy_forward.1
$region0: #{dqn_policy_forward.1}
  #allocation0 [shape = 'u32[]', space=smem, size = 0x4, offset = 0x4, fixed_abs, tag = 'smem constant byte address 0x4 - core index']
  #allocation1 [shape = 'u32[144,128]{1,0:T(1,128)}', space=vmem, size = 0x12000, scoped, tag = 'internal scratch']
  %s0 = inlined_call_operand.hbm [shape: f32[8,32], index: 0, kind: input, shape index: {}]
  %s1 = inlined_call_operand.hbm [shape: f32[32,128], index: 1, kind: input, shape index: {}]
  %s2 = inlined_call_operand.hbm [shape: f32[128,128], index: 2, kind: input, shape index: {}]
  %s3 = inlined_call_operand.hbm [shape: f32[128,128], index: 3, kind: input, shape index: {}]
  %s4 = inlined_call_operand.vmem [shape: f32[8,128], index: 4, kind: input, shape index: {}]
  %s5 = inlined_call_operand.hbm [shape: f32[8,128], index: 5, kind: output, shape index: {0}]
  %s6 = inlined_call_operand.vmem [shape: s32[8,1], index: 6, kind: output, shape index: {1}]
  %7 = xla_tuple %s5, %s6
  %s8 = sld [smem:[#allocation0]]
  $region54: #{dqn_policy_forward.1} parent=0
    _
  %s10 = ssub.s32 1, %s8
  %s11 = scalar_select 0, %s10, %s8
  $region1: #{dqn_policy_forward.1} parent=0
    #allocation2 [shape = 'u8[4096]{0}', space=vmem, size = 0x1000, scoped, tag = 'input window, operand 0, single buffered']
    #allocation3 [shape = 's32[1]{0}', space=sflag, size = 0x4, scoped, tag = 'scoped memory for dqn_policy_forward.1']
    #allocation4 [shape = 's32[1]{0}', space=sflag, size = 0x4, scoped, tag = 'scoped memory for dqn_policy_forward.1']
    #allocation5 [shape = 'u8[16384]{0}', space=vmem, size = 0x4000, scoped, tag = 'input window, operand 1, single buffered']
    #allocation6 [shape = 's32[1]{0}', space=sflag, size = 0x4, scoped, tag = 'scoped memory for dqn_policy_forward.1']
    #allocation7 [shape = 'u8[65536]{0}', space=vmem, size = 0x10000, scoped, tag = 'input window, operand 2, single buffered']
    #allocation8 [shape = 'u8[65536]{0}', space=vmem, size = 0x10000, scoped, tag = 'input window, operand 3, single buffered']
    #allocation9 [shape = 's32[1]{0}', space=sflag, size = 0x4, scoped, tag = 'scoped memory for dqn_policy_forward.1']
    #allocation10 [shape = 'u8[4096]{0}', space=vmem, size = 0x1000, scoped, tag = 'output window, operand 0, single buffered']
    %12 = vsyncpa [#allocation3], 0
    %13 = vsyncpa [#allocation6], 0
    %14 = vsyncpa [#allocation9], 0
    %15 = vsyncpa [#allocation4], 0
    // Predicated region
    $region2: #{dqn_policy_forward.1} parent=1 // pred_check
      _
    $region3: #{dqn_policy_forward.1} parent=1 // pred_check_branch
      %17 = sbr.rel (0) target = $region5
    $region4: #{dqn_policy_forward.1} parent=1 // pred_region
      %s19 = ssub.s32 128, 128
      %20 = vsyncadd [#allocation3], %s19
      %s22 = sshll.u32 [#allocation2], 4
      %s23 = int_to_ptr.vmem [resolvable:$true] %s22
      %25 = dma.hbm_to_vmem [thread:$0]  %s0, 128, %s23, [#allocation3]
    $region5: #{dqn_policy_forward.1} parent=1 // pred_fallthru
      _
    // Predicated region
    $region6: #{dqn_policy_forward.1} parent=1 // pred_check
      _
    $region7: #{dqn_policy_forward.1} parent=1 // pred_check_branch
      %27 = sbr.rel (0) target = $region9
    $region8: #{dqn_policy_forward.1} parent=1 // pred_region
      %s29 = ssub.s32 512, 512
      %30 = vsyncadd [#allocation6], %s29
      %s31 = sshll.u32 [#allocation5], 4
      %s32 = int_to_ptr.vmem [resolvable:$true] %s31
      %37 = dma.hbm_to_vmem [thread:$0]  %s1, 512, %s32, [#allocation6], 128, 128, 8
    $region9: #{dqn_policy_forward.1} parent=1 // pred_fallthru
      _
    // Predicated region
    $region10: #{dqn_policy_forward.1} parent=1 // pred_check
      _
    $region11: #{dqn_policy_forward.1} parent=1 // pred_check_branch
      %39 = sbr.rel (0) target = $region13
    $region12: #{dqn_policy_forward.1} parent=1 // pred_region
      %s41 = ssub.s32 2048, 2048
      %42 = vsyncadd [#allocation6], %s41
      %s43 = sshll.u32 [#allocation7], 4
      %s44 = int_to_ptr.vmem [resolvable:$true] %s43
      %49 = dma.hbm_to_vmem [thread:$0]  %s2, 2048, %s44, [#allocation6], 128, 128, 8
    $region13: #{dqn_policy_forward.1} parent=1 // pred_fallthru
      _
    // Predicated region
    $region14: #{dqn_policy_forward.1} parent=1 // pred_check
      _
    $region15: #{dqn_policy_forward.1} parent=1 // pred_check_branch
      %51 = sbr.rel (0) target = $region17
    $region16: #{dqn_policy_forward.1} parent=1 // pred_region
      %s53 = ssub.s32 2048, 2048
      %54 = vsyncadd [#allocation9], %s53
      %s55 = sshll.u32 [#allocation8], 4
      %s56 = int_to_ptr.vmem [resolvable:$true] %s55
      %61 = dma.hbm_to_vmem [thread:$0]  %s3, 2048, %s56, [#allocation9], 128, 128, 8
    $region17: #{dqn_policy_forward.1} parent=1 // pred_fallthru
      _
    // Predicated region
    $region18: #{dqn_policy_forward.1} parent=1 // pred_check
      _
    $region19: #{dqn_policy_forward.1} parent=1 // pred_check_branch
      %63 = sbr.rel (0) target = $region21
    $region20: #{dqn_policy_forward.1} parent=1 // pred_region
      _
    $region21: #{dqn_policy_forward.1} parent=1 // pred_fallthru
      _
    // Predicated region
    $region22: #{dqn_policy_forward.1} parent=1 // pred_check
      _
    $region23: #{dqn_policy_forward.1} parent=1 // pred_check_branch
      %65 = sbr.rel (0) target = $region25
    $region24: #{dqn_policy_forward.1} parent=1 // pred_region
      %66 = dma.done [#allocation3], 128
    $region25: #{dqn_policy_forward.1} parent=1 // pred_fallthru
      _
    // Predicated region
    $region26: #{dqn_policy_forward.1} parent=1 // pred_check
      _
    $region27: #{dqn_policy_forward.1} parent=1 // pred_check_branch
      %68 = sbr.rel (0) target = $region29
    $region28: #{dqn_policy_forward.1} parent=1 // pred_region
      %69 = dma.done [#allocation6], 512
    $region29: #{dqn_policy_forward.1} parent=1 // pred_fallthru
      _
    // Predicated region
    $region30: #{dqn_policy_forward.1} parent=1 // pred_check
      _
    $region31: #{dqn_policy_forward.1} parent=1 // pred_check_branch
      %71 = sbr.rel (0) target = $region33
    $region32: #{dqn_policy_forward.1} parent=1 // pred_region
      %72 = dma.done [#allocation6], 2048
    $region33: #{dqn_policy_forward.1} parent=1 // pred_fallthru
      _
    // Predicated region
    $region34: #{dqn_policy_forward.1} parent=1 // pred_check
      _
    $region35: #{dqn_policy_forward.1} parent=1 // pred_check_branch
      %74 = sbr.rel (0) target = $region37
    $region36: #{dqn_policy_forward.1} parent=1 // pred_region
      %75 = dma.done [#allocation9], 2048
    $region37: #{dqn_policy_forward.1} parent=1 // pred_fallthru
      _
    %v76 = vld [vmem:[#allocation2] sm:$0xff]
    %v77 = vld [vmem:[%s4] sm:$0xff]
    %v78 = vld [vmem:[#allocation5] sm:$0xff]
    %v79 = vld [vmem:[#allocation5 + $0x8] sm:$0xff]
    %v80 = vld [vmem:[#allocation5 + $0x10] sm:$0xff]
    %v81 = vld [vmem:[#allocation5 + $0x18] sm:$0xff]
    %v82 = vlaneseq
    %v83 = vshrl.u32 %v82, 7
    %v84 = vsub.s32 0, %v83
    %v85 = vrot.slane %v77, %v84
    %vm86 = vcmask 261120
    %v88 = vsel %vm86, %v76, 0
    %90 = vmatprep.subr.mxu0 0.0
    %91 = vmatpush1.msra.mxu0 %v78
    %92 = vmatprep.subr.mxu0 0.0
    %93 = vmatpush1.msra.mxu0 %v79
    %94 = vmatprep.subr.mxu0 0.0
    %95 = vmatpush1.msra.mxu0 %v80
    %96 = vmatprep.subr.mxu0 0.0
    %97 = vmatpush1.msra.mxu0 %v81
    %98 = vmatprep.subr.mxu0 0.0
    %99 = vmatpush1.msra.mxu0 0.0
    %100 = vmatprep.subr.mxu0 0.0
    %101 = vmatpush1.msra.mxu0 0.0
    %102 = vmatprep.subr.mxu0 0.0
    %103 = vmatpush1.msra.mxu0 0.0
    %104 = vmatprep.subr.mxu0 0.0
    %105 = vmatpush1.msra.mxu0 0.0
    %106 = vmatprep.subr.mxu0 0.0
    %107 = vmatpush1.msra.mxu0 0.0
    %108 = vmatprep.subr.mxu0 0.0
    %109 = vmatpush1.msra.mxu0 0.0
    %110 = vmatprep.subr.mxu0 0.0
    %111 = vmatpush1.msra.mxu0 0.0
    %112 = vmatprep.subr.mxu0 0.0
    %113 = vmatpush1.msra.mxu0 0.0
    %114 = vmatprep.subr.mxu0 0.0
    %115 = vmatpush1.msra.mxu0 0.0
    %116 = vmatprep.subr.mxu0 0.0
    %117 = vmatpush1.msra.mxu0 0.0
    %118 = vmatprep.subr.mxu0 0.0
    %119 = vmatpush1.msra.mxu0 0.0
    %120 = vmatprep.subr.mxu0 0.0
    %121 = vmatpush1.msra.mxu0 0.0
    %122 = vmatprep.subr.mxu0 0.0
    %123 = vmatpush1.msra.mxu0 0.0
    %124 = vmatprep.subr.mxu0 0.0
    %125 = vmatpush1.msra.mxu0 0.0
    %126 = vmatprep.subr.mxu0 0.0
    %127 = vmatpush1.msra.mxu0 0.0
    %128 = vmatprep.subr.mxu0 0.0
    %129 = vmatpush1.msra.mxu0 0.0
    %130 = vmatprep.subr.mxu0 0.0
    %131 = vmatpush1.msra.mxu0 0.0
    %132 = vmatprep.subr.mxu0 0.0
    %133 = vmatpush1.msra.mxu0 0.0
    %134 = vmatprep.subr.mxu0 0.0
    %135 = vmatpush1.msra.mxu0 0.0
    %136 = vmatprep.subr.mxu0 0.0
    %137 = vmatpush1.msra.mxu0 0.0
    %138 = vmatprep.subr.mxu0 0.0
    %139 = vmatpush1.msra.mxu0 0.0
    %140 = vmatprep.subr.mxu0 0.0
    %141 = vmatpush1.msra.mxu0 0.0
    %142 = vmatprep.subr.mxu0 0.0
    %143 = vmatpush1.msra.mxu0 0.0
    %144 = vmatprep.subr.mxu0 0.0
    %145 = vmatpush1.msra.mxu0 0.0
    %146 = vmatprep.subr.mxu0 0.0
    %147 = vmatpush1.msra.mxu0 0.0
    %148 = vmatprep.subr.mxu0 0.0
    %149 = vmatpush1.msra.mxu0 0.0
    %150 = vmatprep.subr.mxu0 0.0
    %151 = vmatpush1.msra.mxu0 0.0
    %152 = vmatprep.subr.mxu0 0.0
    %153 = vmatpush1.msra.mxu0 0.0
    %154 = vmatprep.mubr.f32.mxu0 0.0
    %155 = vmatmul.mubr.f32.gmra.mrb[0].mxu0 %v88
    %v156 = vpop.f32.mrb[0].mxu0
    %v157 = vadd.f32 %v85, %v156
    %v158 = vpop.f32.mrb[0].mxu0
    %159 = vdwg.mxu0
    %v160 = vmax.f32 %v157, 0.0
    %v161 = vrot.slane %v160, 4
    %v162 = vadd.f32 %v160, %v161
    %v163 = vrot.slane %v162, 2
    %v164 = vadd.f32 %v162, %v163
    %v165 = vrot.slane %v164, 1
    %v166 = vadd.f32 %v164, %v165
    %v167 = vrcp.pop 8.0
    %v168 = vmul.f32 %v166, %v167
    %v169 = vsub.f32 %v160, %v168
    %v170 = vmul.f32 %v169, %v169
    %v171 = vrot.slane %v170, 4
    %v172 = vadd.f32 %v170, %v171
    %v173 = vrot.slane %v172, 2
    %v174 = vadd.f32 %v172, %v173
    %v175 = vrot.slane %v174, 1
    %v176 = vadd.f32 %v174, %v175
    %v177 = vmul.f32 %v176, %v167
    %v178 = vadd.f32 %v177, 1e-05
    %v179 = vrsqrt.pop %v178
    %v180 = vmul.f32 %v77, %v179
    %v181 = vlaneseq
    %v182 = vshrl.u32 %v181, 7
    %v183 = vsub.s32 1, %v182
    %v184 = vrot.slane %v180, %v183
    %v185 = vmul.f32 %v169, %v184
    %v186 = vlaneseq
    %v187 = vshrl.u32 %v186, 7
    %v188 = vsub.s32 2, %v187
    %v189 = vrot.slane %v77, %v188
    %v190 = vadd.f32 %v185, %v189
    %v191 = vld [vmem:[#allocation7] sm:$0xff]
    %v192 = vld [vmem:[#allocation7 + $0x8] sm:$0xff]
    %v193 = vld [vmem:[#allocation7 + $0x10] sm:$0xff]
    %v194 = vld [vmem:[#allocation7 + $0x18] sm:$0xff]
    %v195 = vld [vmem:[#allocation7 + $0x20] sm:$0xff]
    %v196 = vld [vmem:[#allocation7 + $0x28] sm:$0xff]
    %v197 = vld [vmem:[#allocation7 + $0x30] sm:$0xff]
    %v198 = vld [vmem:[#allocation7 + $0x38] sm:$0xff]
    %v199 = vld [vmem:[#allocation7 + $0x40] sm:$0xff]
    %v200 = vld [vmem:[#allocation7 + $0x48] sm:$0xff]
    %v201 = vld [vmem:[#allocation7 + $0x50] sm:$0xff]
    %v202 = vld [vmem:[#allocation7 + $0x58] sm:$0xff]
    %v203 = vld [vmem:[#allocation7 + $0x60] sm:$0xff]
    %v204 = vld [vmem:[#allocation7 + $0x68] sm:$0xff]
    %v205 = vld [vmem:[#allocation7 + $0x70] sm:$0xff]
    %v206 = vld [vmem:[#allocation7 + $0x78] sm:$0xff]
    %v207 = vlaneseq
    %v208 = vshrl.u32 %v207, 7
    %v209 = vsub.s32 3, %v208
    %v210 = vrot.slane %v77, %v209
    %211 = vmatprep.subr.mxu0 0.0
    %212 = vmatpush1.msra.mxu0 %v191
    %213 = vmatprep.subr.mxu0 0.0
    %214 = vmatpush1.msra.mxu0 %v192
    %215 = vmatprep.subr.mxu0 0.0
    %216 = vmatpush1.msra.mxu0 %v193
    %217 = vmatprep.subr.mxu0 0.0
    %218 = vmatpush1.msra.mxu0 %v194
    %219 = vmatprep.subr.mxu0 0.0
    %220 = vmatpush1.msra.mxu0 %v195
    %221 = vmatprep.subr.mxu0 0.0
    %222 = vmatpush1.msra.mxu0 %v196
    %223 = vmatprep.subr.mxu0 0.0
    %224 = vmatpush1.msra.mxu0 %v197
    %225 = vmatprep.subr.mxu0 0.0
    %226 = vmatpush1.msra.mxu0 %v198
    %227 = vmatprep.subr.mxu0 0.0
    %228 = vmatpush1.msra.mxu0 %v199
    %229 = vmatprep.subr.mxu0 0.0
    %230 = vmatpush1.msra.mxu0 %v200
    %231 = vmatprep.subr.mxu0 0.0
    %232 = vmatpush1.msra.mxu0 %v201
    %233 = vmatprep.subr.mxu0 0.0
    %234 = vmatpush1.msra.mxu0 %v202
    %235 = vmatprep.subr.mxu0 0.0
    %236 = vmatpush1.msra.mxu0 %v203
    %237 = vmatprep.subr.mxu0 0.0
    %238 = vmatpush1.msra.mxu0 %v204
    %239 = vmatprep.subr.mxu0 0.0
    %240 = vmatpush1.msra.mxu0 %v205
    %241 = vmatprep.subr.mxu0 0.0
    %242 = vmatpush1.msra.mxu0 %v206
    %243 = vmatprep.subr.mxu0 0.0
    %244 = vmatpush1.msra.mxu0 0.0
    %245 = vmatprep.subr.mxu0 0.0
    %246 = vmatpush1.msra.mxu0 0.0
    %247 = vmatprep.subr.mxu0 0.0
    %248 = vmatpush1.msra.mxu0 0.0
    %249 = vmatprep.subr.mxu0 0.0
    %250 = vmatpush1.msra.mxu0 0.0
    %251 = vmatprep.subr.mxu0 0.0
    %252 = vmatpush1.msra.mxu0 0.0
    %253 = vmatprep.subr.mxu0 0.0
    %254 = vmatpush1.msra.mxu0 0.0
    %255 = vmatprep.subr.mxu0 0.0
    %256 = vmatpush1.msra.mxu0 0.0
    %257 = vmatprep.subr.mxu0 0.0
    %258 = vmatpush1.msra.mxu0 0.0
    %259 = vmatprep.subr.mxu0 0.0
    %260 = vmatpush1.msra.mxu0 0.0
    %261 = vmatprep.subr.mxu0 0.0
    %262 = vmatpush1.msra.mxu0 0.0
    %263 = vmatprep.subr.mxu0 0.0
    %264 = vmatpush1.msra.mxu0 0.0
    %265 = vmatprep.subr.mxu0 0.0
    %266 = vmatpush1.msra.mxu0 0.0
    %267 = vmatprep.subr.mxu0 0.0
    %268 = vmatpush1.msra.mxu0 0.0
    %269 = vmatprep.subr.mxu0 0.0
    %270 = vmatpush1.msra.mxu0 0.0
    %271 = vmatprep.subr.mxu0 0.0
    %272 = vmatpush1.msra.mxu0 0.0
    %273 = vmatprep.subr.mxu0 0.0
    %274 = vmatpush1.msra.mxu0 0.0
    %275 = vmatprep.mubr.f32.mxu0 0.0
    %276 = vmatmul.mubr.f32.gmra.mrb[0].mxu0 %v190
    %v277 = vpop.f32.mrb[0].mxu0
    %v278 = vadd.f32 %v210, %v277
    %v279 = vpop.f32.mrb[0].mxu0
    %280 = vdwg.mxu0
    %v281 = vmax.f32 %v278, 0.0
    %v282 = vrot.slane %v281, 4
    %v283 = vadd.f32 %v281, %v282
    %v284 = vrot.slane %v283, 2
    %v285 = vadd.f32 %v283, %v284
    %v286 = vrot.slane %v285, 1
    %v287 = vadd.f32 %v285, %v286
    %v288 = vmul.f32 %v287, %v167
    %v289 = vsub.f32 %v281, %v288
    %v290 = vmul.f32 %v289, %v289
    %v291 = vrot.slane %v290, 4
    %v292 = vadd.f32 %v290, %v291
    %v293 = vrot.slane %v292, 2
    %v294 = vadd.f32 %v292, %v293
    %v295 = vrot.slane %v294, 1
    %v296 = vadd.f32 %v294, %v295
    %v297 = vmul.f32 %v296, %v167
    %v298 = vadd.f32 %v297, 1e-05
    %v299 = vrsqrt.pop %v298
    %v300 = vmul.f32 %v77, %v299
    %v301 = vlaneseq
    %v302 = vshrl.u32 %v301, 7
    %v303 = vsub.s32 4, %v302
    %v304 = vrot.slane %v300, %v303
    %v305 = vmul.f32 %v289, %v304
    %v306 = vlaneseq
    %v307 = vshrl.u32 %v306, 7
    %v308 = vsub.s32 5, %v307
    %v309 = vrot.slane %v77, %v308
    %v310 = vadd.f32 %v305, %v309
    %v311 = vld [vmem:[#allocation8] sm:$0xff]
    %v312 = vld [vmem:[#allocation8 + $0x8] sm:$0xff]
    %v313 = vld [vmem:[#allocation8 + $0x10] sm:$0xff]
    %v314 = vld [vmem:[#allocation8 + $0x18] sm:$0xff]
    %v315 = vld [vmem:[#allocation8 + $0x20] sm:$0xff]
    %v316 = vld [vmem:[#allocation8 + $0x28] sm:$0xff]
    %v317 = vld [vmem:[#allocation8 + $0x30] sm:$0xff]
    %v318 = vld [vmem:[#allocation8 + $0x38] sm:$0xff]
    %v319 = vld [vmem:[#allocation8 + $0x40] sm:$0xff]
    %v320 = vld [vmem:[#allocation8 + $0x48] sm:$0xff]
    %v321 = vld [vmem:[#allocation8 + $0x50] sm:$0xff]
    %v322 = vld [vmem:[#allocation8 + $0x58] sm:$0xff]
    %v323 = vld [vmem:[#allocation8 + $0x60] sm:$0xff]
    %v324 = vld [vmem:[#allocation8 + $0x68] sm:$0xff]
    %v325 = vld [vmem:[#allocation8 + $0x70] sm:$0xff]
    %v326 = vld [vmem:[#allocation8 + $0x78] sm:$0xff]
    %v327 = vlaneseq
    %v328 = vshrl.u32 %v327, 7
    %v329 = vsub.s32 6, %v328
    %v330 = vrot.slane %v77, %v329
    %331 = vmatprep.subr.mxu0 0.0
    %332 = vmatpush1.msra.mxu0 %v311
    %333 = vmatprep.subr.mxu0 0.0
    %334 = vmatpush1.msra.mxu0 %v312
    %335 = vmatprep.subr.mxu0 0.0
    %336 = vmatpush1.msra.mxu0 %v313
    %337 = vmatprep.subr.mxu0 0.0
    %338 = vmatpush1.msra.mxu0 %v314
    %339 = vmatprep.subr.mxu0 0.0
    %340 = vmatpush1.msra.mxu0 %v315
    %341 = vmatprep.subr.mxu0 0.0
    %342 = vmatpush1.msra.mxu0 %v316
    %343 = vmatprep.subr.mxu0 0.0
    %344 = vmatpush1.msra.mxu0 %v317
    %345 = vmatprep.subr.mxu0 0.0
    %346 = vmatpush1.msra.mxu0 %v318
    %347 = vmatprep.subr.mxu0 0.0
    %348 = vmatpush1.msra.mxu0 %v319
    %349 = vmatprep.subr.mxu0 0.0
    %350 = vmatpush1.msra.mxu0 %v320
    %351 = vmatprep.subr.mxu0 0.0
    %352 = vmatpush1.msra.mxu0 %v321
    %353 = vmatprep.subr.mxu0 0.0
    %354 = vmatpush1.msra.mxu0 %v322
    %355 = vmatprep.subr.mxu0 0.0
    %356 = vmatpush1.msra.mxu0 %v323
    %357 = vmatprep.subr.mxu0 0.0
    %358 = vmatpush1.msra.mxu0 %v324
    %359 = vmatprep.subr.mxu0 0.0
    %360 = vmatpush1.msra.mxu0 %v325
    %361 = vmatprep.subr.mxu0 0.0
    %362 = vmatpush1.msra.mxu0 %v326
    %363 = vmatprep.subr.mxu0 0.0
    %364 = vmatpush1.msra.mxu0 0.0
    %365 = vmatprep.subr.mxu0 0.0
    %366 = vmatpush1.msra.mxu0 0.0
    %367 = vmatprep.subr.mxu0 0.0
    %368 = vmatpush1.msra.mxu0 0.0
    %369 = vmatprep.subr.mxu0 0.0
    %370 = vmatpush1.msra.mxu0 0.0
    %371 = vmatprep.subr.mxu0 0.0
    %372 = vmatpush1.msra.mxu0 0.0
    %373 = vmatprep.subr.mxu0 0.0
    %374 = vmatpush1.msra.mxu0 0.0
    %375 = vmatprep.subr.mxu0 0.0
    %376 = vmatpush1.msra.mxu0 0.0
    %377 = vmatprep.subr.mxu0 0.0
    %378 = vmatpush1.msra.mxu0 0.0
    %379 = vmatprep.subr.mxu0 0.0
    %380 = vmatpush1.msra.mxu0 0.0
    %381 = vmatprep.subr.mxu0 0.0
    %382 = vmatpush1.msra.mxu0 0.0
    %383 = vmatprep.subr.mxu0 0.0
    %384 = vmatpush1.msra.mxu0 0.0
    %385 = vmatprep.subr.mxu0 0.0
    %386 = vmatpush1.msra.mxu0 0.0
    %387 = vmatprep.subr.mxu0 0.0
    %388 = vmatpush1.msra.mxu0 0.0
    %389 = vmatprep.subr.mxu0 0.0
    %390 = vmatpush1.msra.mxu0 0.0
    %391 = vmatprep.subr.mxu0 0.0
    %392 = vmatpush1.msra.mxu0 0.0
    %393 = vmatprep.subr.mxu0 0.0
    %394 = vmatpush1.msra.mxu0 0.0
    %395 = vmatprep.mubr.f32.mxu0 0.0
    %396 = vmatmul.mubr.f32.gmra.mrb[0].mxu0 %v310
    %v397 = vpop.f32.mrb[0].mxu0
    %v398 = vadd.f32 %v330, %v397
    %v399 = vpop.f32.mrb[0].mxu0
    %400 = vdwg.mxu0
    %401 = vst [vmem:[#allocation10] sm:$0xff] %v398
    %v402 = vlaneseq
    %v403 = vand.u32 %v402, 127
    %404 = vmax.xlane.f32.xlu0 %v398
    %v405 = vpop.xlane.xlu0 %404
    %vm406 = vcmp.eq.f32.partialorder %v398, %v405
    %v407 = vsel %vm406, %v403, 128
    %v408 = vand.u32 %v407, 65535
    %v409 = vshra.s32 %v407, 16
    %v410 = vcvt.s32.f32 %v408
    %v411 = vcvt.s32.f32 %v409
    %412 = vmin.xlane.f32.xlu0 %v411
    %v413 = vpop.xlane.xlu0 %412
    %vm414 = vcmp.eq.f32.partialorder %v411, %v413
    %v415 = vsel %vm414, %v410, inf
    %416 = vmin.xlane.f32.xlu0 %v415
    %v417 = vpop.xlane.xlu0 %416
    %v418 = vcvt.f32.s32 %v417
    %v419 = vcvt.f32.s32 %v413
    %v420 = vshll.u32 %v419, 16
    %v421 = vadd.s32 %v420, %v418
    %vm422 = vcmask 7168
    %423 = vst.msk [vmem:[%s6] sm:$0xff] %vm422, %v421
    // Predicated region
    $region38: #{dqn_policy_forward.1} parent=1 // pred_check
      _
    $region39: #{dqn_policy_forward.1} parent=1 // pred_check_branch
      %425 = sbr.rel (0) target = $region41
    $region40: #{dqn_policy_forward.1} parent=1 // pred_region
      %s427 = ssub.s32 128, 128
      %428 = vsyncadd [#allocation4], %s427
      %s430 = sshll.u32 [#allocation10], 4
      %s431 = int_to_ptr.vmem [resolvable:$true] %s430
      %433 = dma.vmem_to_hbm [thread:$0]  %s431, 128, %s5, [#allocation4]
    $region41: #{dqn_policy_forward.1} parent=1 // pred_fallthru
      _
    // Predicated region
    $region42: #{dqn_policy_forward.1} parent=1 // pred_check
      _
    $region43: #{dqn_policy_forward.1} parent=1 // pred_check_branch
      %435 = sbr.rel (0) target = $region45
    $region44: #{dqn_policy_forward.1} parent=1 // pred_region
      _
    $region45: #{dqn_policy_forward.1} parent=1 // pred_fallthru
      _
    // Predicated region
    $region46: #{dqn_policy_forward.1} parent=1 // pred_check
      _
    $region47: #{dqn_policy_forward.1} parent=1 // pred_check_branch
      %437 = sbr.rel (0) target = $region49
    $region48: #{dqn_policy_forward.1} parent=1 // pred_region
      %438 = dma.done [#allocation4], 128
    $region49: #{dqn_policy_forward.1} parent=1 // pred_fallthru
      _
    // Predicated region
    $region50: #{dqn_policy_forward.1} parent=1 // pred_check
      _
    $region51: #{dqn_policy_forward.1} parent=1 // pred_check_branch
      %440 = sbr.rel (0) target = $region53
    $region52: #{dqn_policy_forward.1} parent=1 // pred_region
      _
    $region53: #{dqn_policy_forward.1} parent=1 // pred_fallthru
      _
    %441 = vsyncpa [#allocation3], 1
    %442 = vsyncpa [#allocation6], 1
    %443 = vsyncpa [#allocation9], 1
    %444 = vsyncpa [#allocation4], 1

</llo_original>
